<compile_context>
chip_gen: v5e
topology: v5e:2x2
jax: 0.10.0
libtpu: 0.0.40
codegen_flags: <defaults>
</compile_context>

<pallas_src>
import functools

import jax
import jax.numpy as jnp
from jax.experimental import pallas as pl
from jax.experimental.pallas import tpu as pltpu

LANES = 128
_ACC_ROWS = 8                           # f32 sublane count: one (8,128) accumulator per core
_TARGET_TILE_BYTES = 4 * 1024 * 1024    # 2-4 MiB tile sweet spot
_MAX_SMALL_BYTES = 16 * 1024 * 1024     # hard cap on the single-block slab


def _vmem_capacity_bytes() -> int:
    """Physical per-core VMEM (64 MiB v7x, 128 MiB v5e/v6e); conservative fallback."""
    try:
        cap = int(pltpu.get_tpu_info().vmem_capacity_bytes)
        if cap > 0:
            return cap
    except Exception:
        pass
    return 64 * 1024 * 1024


# ----------------------------------------------------------------------------
# Kernels
# ----------------------------------------------------------------------------
def _centered_whole_kernel(x_ref, o_ref, *, inv_n):
    """Single whole-array block: mean over the TRUE element count, subtract."""
    x = x_ref[...].astype(jnp.float32)
    col = jnp.sum(x, axis=0, keepdims=True)        # per-lane partials (VPU)
    mean = jnp.sum(col) * inv_n                    # one cross-lane reduce (XLU)
    o_ref[...] = (x - mean).astype(o_ref.dtype)


def _colsum_kernel(x_ref, sums_ref, *, tile_rows, tiles_per_core, rows):
    """Pass 1: per-lane partial sums.

    Leading grid axis of 2 is 'parallel' so each v7x TensorCore streams half
    of the tiles into its own (8,128) accumulator block.  Rows past the end of
    the real array (Pallas partial-block padding, or the duplicate clamped
    tile when num_tiles is odd) are masked to zero, so the sum is exact.
    """
    i = pl.program_id(1)

    @pl.when(i == 0)
    def _():
        sums_ref[...] = jnp.zeros_like(sums_ref)

    gtile = pl.program_id(0) * tiles_per_core + i      # UNclamped global tile id
    valid = rows - gtile * tile_rows                   # valid rows in this tile (may be <= 0)
    row_id = jax.lax.broadcasted_iota(jnp.int32, (tile_rows, LANES), 0)
    x = x_ref[...].astype(jnp.float32)
    x = jnp.where(row_id < valid, x, 0.0)
    sums_ref[0:1, :] += jnp.sum(x, axis=0, keepdims=True)


def _subtract_kernel(sums_ref, x_ref, o_ref, *, inv_n):
    """Pass 2: finish the mean from the tiny resident partial-sum block and
    subtract.  Out-of-range rows of the final partial tile are dropped by
    Pallas on store, so no masking is needed here."""
    mean = jnp.sum(sums_ref[...]) * inv_n              # 2048-elem finish, hidden under DMA
    o_ref[...] = (x_ref[...].astype(jnp.float32) - mean).astype(o_ref.dtype)


# ----------------------------------------------------------------------------
# Wrapper
# ----------------------------------------------------------------------------
def centered_layer(x: jax.Array, *, small_limit_bytes=None, tile_rows=None) -> jax.Array:
    """X - X.mean() over all elements (matches torch X.mean() with no dim)."""
    orig_shape = x.shape
    orig_dtype = x.dtype
    n = x.size
    if n == 0:
        return x
    itemsize = jnp.dtype(orig_dtype).itemsize

    vmem_cap = _vmem_capacity_bytes()
    vmem_limit = min((vmem_cap * 3) // 4, 96 * 1024 * 1024)   # 48 MiB v7x / 96 MiB v5e,v6e
    if small_limit_bytes is None:
        small_limit_bytes = min(vmem_limit // 5, _MAX_SMALL_BYTES)

    flat = x.reshape(-1)
    pad = (-n) % LANES
    if pad:
        # TODO(synk): misaligned (N % 128 != 0) inputs still pay one jnp.pad copy
        # here and one output slice below; a fully copy-free tail would need a
        # remainder kernel / manual DMA on a pl.ANY ref.
        flat = jnp.pad(flat, (0, pad))
    rows = flat.size // LANES
    x2d = flat.reshape(rows, LANES)
    inv_n = 1.0 / n                                    # TRUE count -> padding never biases

    if n * itemsize <= small_limit_bytes:
        # ---------------- single whole-array VMEM kernel (2N HBM traffic) ----
        out2d = pl.pallas_call(
            functools.partial(_centered_whole_kernel, inv_n=inv_n),
            out_shape=jax.ShapeDtypeStruct((rows, LANES), orig_dtype),
            compiler_params=pltpu.CompilerParams(vmem_limit_bytes=vmem_limit),
            cost_estimate=pl.CostEstimate(
                flops=2 * rows * LANES, transcendentals=0,
                bytes_accessed=2 * rows * LANES * itemsize),
        )(x2d)
    else:
        # ---------------- tiled two-pass pipeline (3N HBM traffic) -----------
        if tile_rows is None:
            tile_rows = max(256, ((_TARGET_TILE_BYTES // (LANES * itemsize)) // 32) * 32)
        if tile_rows >= rows:
            tile_rows = rows                           # full-dim block is always legal
        num_tiles = pl.cdiv(rows, tile_rows)
        tiles_per_core = pl.cdiv(num_tiles, 2)

        # Pass 1: per-lane partial sums; leading axis of 2 -> both v7x TCs.
        # Out-of-range tile indices (odd num_tiles) are clamped in the index
        # map (in-bounds DMA) and zero-masked inside the kernel.
        col_sums = pl.pallas_call(
            functools.partial(_colsum_kernel, tile_rows=tile_rows,
                              tiles_per_core=tiles_per_core, rows=rows),
            out_shape=jax.ShapeDtypeStruct((2 * _ACC_ROWS, LANES), jnp.float32),
            grid=(2, tiles_per_core),
            in_specs=[pl.BlockSpec(
                (tile_rows, LANES),
                lambda c, i: (jnp.minimum(c * tiles_per_core + i, num_tiles - 1), 0))],
            out_specs=pl.BlockSpec((_ACC_ROWS, LANES), lambda c, i: (c, 0)),
            compiler_params=pltpu.CompilerParams(
                dimension_semantics=("parallel", "arbitrary"),
                vmem_limit_bytes=vmem_limit),
            cost_estimate=pl.CostEstimate(
                flops=rows * LANES, transcendentals=0,
                bytes_accessed=rows * LANES * itemsize),
        )(x2d)

        # Pass 2: streaming subtract; mean is finished in-kernel from the tiny
        # resident partial-sum block (no intermediate XLA reduce op).
        out2d = pl.pallas_call(
            functools.partial(_subtract_kernel, inv_n=inv_n),
            out_shape=jax.ShapeDtypeStruct((rows, LANES), orig_dtype),
            grid=(num_tiles,),
            in_specs=[
                pl.BlockSpec((2 * _ACC_ROWS, LANES), lambda i: (0, 0)),
                pl.BlockSpec((tile_rows, LANES), lambda i: (i, 0)),
            ],
            out_specs=pl.BlockSpec((tile_rows, LANES), lambda i: (i, 0)),
            compiler_params=pltpu.CompilerParams(
                dimension_semantics=("parallel",),
                vmem_limit_bytes=vmem_limit),
            cost_estimate=pl.CostEstimate(
                flops=rows * LANES, transcendentals=0,
                bytes_accessed=2 * rows * LANES * itemsize),
        )(col_sums, x2d)

    if pad:
        return out2d.reshape(-1)[:n].reshape(orig_shape)
    return out2d.reshape(orig_shape)


# ----------------------------------------------------------------------------
# Test
# ----------------------------------------------------------------------------
if __name__ == "__main__":
    root = jax.random.PRNGKey(0)
    k1, k2, k3, k4 = jax.random.split(root, 4)

    # 1) Small NCHW input -> single whole-array VMEM kernel (lane-aligned).
    x1 = jax.random.normal(k1, (2, 4, 16, 16), dtype=jnp.float32)
    o1 = jax.block_until_ready(centered_layer(x1))
    r1 = x1 - jnp.mean(x1)
    assert o1.shape == x1.shape and o1.dtype == x1.dtype
    assert jnp.allclose(o1, r1, atol=1e-5, rtol=1e-5), "small aligned path mismatch"
    assert abs(float(jnp.mean(o1))) < 1e-5

    # 2) Small misaligned input (pad/slice fallback path).
    x2 = jax.random.normal(k2, (3, 5, 33, 37), dtype=jnp.float32)
    o2 = jax.block_until_ready(centered_layer(x2))
    r2 = x2 - jnp.mean(x2)
    assert jnp.allclose(o2, r2, atol=1e-5, rtol=1e-5), "small misaligned path mismatch"

    # 3) Force the tiled two-pass path on a lane-aligned input
    #    (multiple tiles per core, both accumulator rows, no padding at all).
    x3 = jax.random.normal(k3, (4, 8, 64, 128), dtype=jnp.float32)
    o3 = jax.block_until_ready(centered_layer(x3, small_limit_bytes=0, tile_rows=512))
    r3 = x3 - jnp.mean(x3)
    assert jnp.allclose(o3, r3, atol=1e-5, rtol=1e-5), "tiled aligned path mismatch"
    assert abs(float(jnp.mean(o3))) < 1e-5

    # 4) Force the tiled path on a misaligned input (exercises the masked
    #    partial last tile and the clamped extra tile when num_tiles is odd).
    x4 = jax.random.normal(k4, (3, 5, 33, 37), dtype=jnp.float32)
    o4 = jax.block_until_ready(centered_layer(x4, small_limit_bytes=0, tile_rows=64))
    r4 = x4 - jnp.mean(x4)
    assert jnp.allclose(o4, r4, atol=1e-5, rtol=1e-5), "tiled misaligned path mismatch"

    print("KERNEL_OK")
</pallas_src>

<mosaic_0001>
module attributes {stable_mosaic.version = 11 : i64} {
  func.func @_centered_whole_kernel(%arg0: memref<16x128xf32, #tpu.memory_space<vmem>>, %arg1: memref<16x128xf32, #tpu.memory_space<vmem>>) attributes {dimension_semantics = [], scalar_prefetch = 0 : i64, scratch_operands = 0 : i64, tpu.core_type = #tpu.core_type<tc>} {
    %c0 = arith.constant 0 : index
    %c0_0 = arith.constant 0 : index
    %0 = vector.load %arg0[%c0, %c0_0] : memref<16x128xf32, #tpu.memory_space<vmem>>, vector<16x128xf32>
    %cst = arith.constant dense<0.000000e+00> : vector<128xf32>
    %1 = vector.multi_reduction <add>, %0, %cst [0] : vector<16x128xf32> to vector<128xf32>
    %2 = vector.shape_cast %1 : vector<128xf32> to vector<1x128xf32>
    %3 = vector.shape_cast %2 : vector<1x128xf32> to vector<1x1x128xf32>
    %cst_1 = arith.constant dense<0.000000e+00> : vector<1xf32>
    %4 = vector.multi_reduction <add>, %3, %cst_1 [1, 2] : vector<1x1x128xf32> to vector<1xf32>
    %5 = vector.shape_cast %4 : vector<1xf32> to vector<1x1x1xf32>
    %6 = vector.extract %5[0, 0, 0] : f32 from vector<1x1x1xf32>
    %cst_2 = arith.constant 4.8828125E-4 : f32
    %7 = arith.mulf %6, %cst_2 : f32
    %8 = vector.broadcast %7 : f32 to vector<16x128xf32>
    %9 = arith.subf %0, %8 : vector<16x128xf32>
    %c0_3 = arith.constant 0 : index
    %c0_4 = arith.constant 0 : index
    %10 = vector.load %arg1[%c0_3, %c0_4] : memref<16x128xf32, #tpu.memory_space<vmem>>, vector<16x128xf32>
    tpu.vector_store %arg1[%c0_3, %c0_4], %9 {strides = array<i32>} : memref<16x128xf32, #tpu.memory_space<vmem>>, vector<16x128xf32>,
    return
  }
}

</mosaic_0001>

<llo_original>
// kernel: tpu_custom_call.1
$region0: #{tpu_custom_call.1}
  #allocation0 [shape = 'u32[]', space=smem, size = 0x4, offset = 0x4, fixed_abs, tag = 'smem constant byte address 0x4 - core index']
  #allocation1 [shape = 'u32[72,128]{1,0:T(1,128)}', space=vmem, size = 0x9000, scoped, tag = 'internal scratch']
  %s0 = inlined_call_operand.hbm [shape: f32[16,128], index: 0, kind: input, shape index: {}]
  %s1 = inlined_call_operand.hbm [shape: f32[16,128], index: 1, kind: output, shape index: {}]
  %s2 = sld [smem:[#allocation0]]
  $region18: #{tpu_custom_call.1} parent=0
    _
  %s4 = ssub.s32 1, %s2
  %s5 = scalar_select 0, %s4, %s2
  $region1: #{tpu_custom_call.1} parent=0
    #allocation2 [shape = 'u8[8192]{0}', space=vmem, size = 0x2000, scoped, tag = 'input window, operand 0, single buffered']
    #allocation3 [shape = 's32[1]{0}', space=sflag, size = 0x4, scoped, tag = 'scoped memory for tpu_custom_call.1']
    #allocation4 [shape = 's32[1]{0}', space=sflag, size = 0x4, scoped, tag = 'scoped memory for tpu_custom_call.1']
    #allocation5 [shape = 'u8[8192]{0}', space=vmem, size = 0x2000, scoped, tag = 'output window, operand 0, single buffered']
    %6 = vsyncpa [#allocation3], 0
    %7 = vsyncpa [#allocation4], 0
    // Predicated region
    $region2: #{tpu_custom_call.1} parent=1 // pred_check
      _
    $region3: #{tpu_custom_call.1} parent=1 // pred_check_branch
      %9 = sbr.rel (0) target = $region5
    $region4: #{tpu_custom_call.1} parent=1 // pred_region
      %11 = vsyncadd [#allocation3], 0
      %s12 = sshll.u32 %s0, 4
      %s13 = int_to_ptr.hbm [resolvable:$true] %s12
      %s14 = sshll.u32 [#allocation2], 4
      %s15 = int_to_ptr.vmem [resolvable:$true] %s14
      %20 = dma.hbm_to_vmem [thread:$0]  %s13, 256, %s15, [#allocation3], 128, 128, 8
    $region5: #{tpu_custom_call.1} parent=1 // pred_fallthru
      _
    // Predicated region
    $region6: #{tpu_custom_call.1} parent=1 // pred_check
      _
    $region7: #{tpu_custom_call.1} parent=1 // pred_check_branch
      %22 = sbr.rel (0) target = $region9
    $region8: #{tpu_custom_call.1} parent=1 // pred_region
      %24 = dma.done [#allocation3], 256
    $region9: #{tpu_custom_call.1} parent=1 // pred_fallthru
      _
    %v25 = vld [vmem:[#allocation2] sm:$0xff]
    %v26 = vld [vmem:[#allocation2 + $0x8] sm:$0xff]
    %v27 = vadd.f32 %v25, %v26
    %v28 = vrot.slane %v27, 4
    %v29 = vadd.f32 %v27, %v28
    %v30 = vrot.slane %v29, 2
    %v31 = vadd.f32 %v29, %v30
    %v32 = vrot.slane %v31, 1
    %v33 = vadd.f32 %v31, %v32
    %vm34 = vcmask 1040384
    %v35 = vsel %vm34, %v33, 0.0
    %36 = vadd.xlane.f32.xlu0 %v35
    %v37 = vpop.xlane.xlu0 %36
    %v38 = vrot.slane %v37, 4
    %v39 = vadd.f32 %v37, %v38
    %v40 = vrot.slane %v39, 2
    %v41 = vadd.f32 %v39, %v40
    %v42 = vrot.slane %v41, 1
    %v43 = vadd.f32 %v41, %v42
    %s44 = vtos %v43
    %s45 = smul.f32 %s44, 0.00048828125
    %v46 = vstv %s45
    %v47 = vsub.f32 %v25, %v46
    %v48 = vsub.f32 %v26, %v46
    %49 = vst [vmem:[#allocation5] sm:$0xff] %v47
    %50 = vst [vmem:[#allocation5 + $0x8] sm:$0xff] %v48
    // Predicated region
    $region10: #{tpu_custom_call.1} parent=1 // pred_check
      _
    $region11: #{tpu_custom_call.1} parent=1 // pred_check_branch
      %52 = sbr.rel (0) target = $region13
    $region12: #{tpu_custom_call.1} parent=1 // pred_region
      %54 = vsyncadd [#allocation4], 0
      %s55 = sshll.u32 [#allocation5], 4
      %s56 = int_to_ptr.vmem [resolvable:$true] %s55
      %s57 = sshll.u32 %s1, 4
      %s58 = int_to_ptr.hbm [resolvable:$true] %s57
      %63 = dma.vmem_to_hbm [thread:$0]  %s56, 256, %s58, [#allocation4], 128, 128, 8
    $region13: #{tpu_custom_call.1} parent=1 // pred_fallthru
      _
    // Predicated region
    $region14: #{tpu_custom_call.1} parent=1 // pred_check
      _
    $region15: #{tpu_custom_call.1} parent=1 // pred_check_branch
      %65 = sbr.rel (0) target = $region17
    $region16: #{tpu_custom_call.1} parent=1 // pred_region
      %67 = dma.done [#allocation4], 256
    $region17: #{tpu_custom_call.1} parent=1 // pred_fallthru
      _
    %68 = vsyncpa [#allocation3], 1
    %69 = vsyncpa [#allocation4], 1

</llo_original>
